<compile_context>
chip_gen: v6e
topology: v6e:2x2x1
jax: 0.10.0
libtpu: 0.0.40
codegen_flags: <defaults>
</compile_context>

<pallas_src>
import math

import jax
import jax.numpy as jnp
from jax.experimental import pallas as pl
from jax.experimental.pallas import tpu as pltpu


def _make_rowwise_kernel(eps):
    """Unpacked path: each row spans the full lane extent; one full-width store."""
    def kernel(x_ref, scale_ref, shift_ref, o_ref):
        x = x_ref[...].astype(jnp.float32)                       # (T, D)
        mean = jnp.mean(x, axis=-1, keepdims=True)
        centered = x - mean
        var = jnp.mean(centered * centered, axis=-1, keepdims=True)
        inv_std = jax.lax.rsqrt(var + eps)
        out = centered * inv_std * scale_ref[...] + shift_ref[...]
        o_ref[...] = out.astype(o_ref.dtype)                     # single lane-dense store
    return kernel


def _make_packed_kernel(k, d, eps):
    """Lane-packed path: k rows of length d per (k*d)-lane slab.

    Per-segment statistics are computed with masked full-width reductions
    (exact f32, no unaligned lane slices) and merged into full-width mean /
    inv_std maps, so the kernel issues exactly one lane-dense store per tile.
    (A log2(d) pltpu.roll segmented-reduction tree would shave further XLU
    work, but LayerNorm stays well under the HBM roofline with this form.)
    """
    inv_d = 1.0 / float(d)

    def kernel(x_ref, scale_ref, shift_ref, o_ref):
        x = x_ref[...].astype(jnp.float32)                       # (T, k*d)
        width = k * d
        lane = jax.lax.broadcasted_iota(jnp.int32, (1, width), 1)
        mean_full = jnp.zeros_like(x)
        inv_full = jnp.zeros_like(x)
        for j in range(k):                                       # static unroll, k <= 8
            in_seg = jnp.logical_and(lane >= j * d, lane < (j + 1) * d)
            seg_sum = jnp.sum(jnp.where(in_seg, x, 0.0), axis=-1, keepdims=True)
            m = seg_sum * inv_d                                  # (T, 1)
            c = x - m
            v = jnp.sum(jnp.where(in_seg, c * c, 0.0), axis=-1, keepdims=True) * inv_d
            r = jax.lax.rsqrt(v + eps)
            mean_full = jnp.where(in_seg, m, mean_full)
            inv_full = jnp.where(in_seg, r, inv_full)
        out = (x - mean_full) * inv_full * scale_ref[...] + shift_ref[...]
        o_ref[...] = out.astype(o_ref.dtype)                     # single full-width store
    return kernel


def _vmem_limit_bytes():
    try:
        cap = int(pltpu.get_tpu_info().vmem_capacity_bytes)
    except Exception:
        cap = 128 * 1024 * 1024
    # Never request more than half of physical VMEM (v7x has only 64 MiB).
    return min(96 * 1024 * 1024, cap // 2)


def _round_up(v, m):
    return -(-v // m) * m


def _choose_tile_rows(n_rows, row_bytes, target_tile_bytes, pack):
    """Rows per block: sublane-pack aligned, VMEM-budgeted, >= ~8 grid steps."""
    if n_rows <= pack:
        return n_rows                        # one full-array block (grid = 1)
    budget = max(pack, (target_tile_bytes // max(1, row_bytes)) // pack * pack)
    # Aim for >= 8 grid steps (>= 4 per TensorCore on v7x) so DMA and compute
    # always overlap, even when everything would fit in one block; per-step
    # overhead is only ~0.35 us.
    per_step = _round_up(pl.cdiv(n_rows, 8), pack)
    return max(pack, min(budget, per_step))


def layer_normalization(x, scale, shift, *, eps=1e-5):
    """LayerNorm over the last axis of x. x: (..., D); scale/shift: (D,)."""
    orig_shape = x.shape
    dtype = x.dtype
    D = orig_shape[-1]
    rows = 1
    for s in orig_shape[:-1]:
        rows *= s
    x2 = x.reshape(rows, D)

    itemsize = jnp.dtype(dtype).itemsize
    pack = max(8, 32 // itemsize)            # sublane pack: 8 f32, 16 bf16, 32 int8
    vmem_limit = _vmem_limit_bytes()
    # Budget per input block: double-buffered in + out blocks PLUS the f32
    # temporaries (x, mean/inv maps, out) are live at once, so keep each block
    # at ~vmem_limit/16, capped at the measured ~4 MiB roofline plateau (also
    # small enough for v7x's 32 MiB granted VMEM with bf16 inputs).
    target_tile_bytes = min(4 * 1024 * 1024, max(256 * 1024, vmem_limit // 16))

    # Lane-dense packing: pack k rows per lcm(D, 128)-lane slab so every DMA and
    # vector store uses all 128 lanes. rows % k != 0 (rare) falls back to the
    # unpacked path rather than paying a full-array pad + output slice.
    k = 128 // math.gcd(D, 128)
    use_packed = (k > 1) and (k <= 8) and (rows % k == 0)

    compiler_params = pltpu.CompilerParams(
        dimension_semantics=("parallel",),
        vmem_limit_bytes=vmem_limit,
    )

    if use_packed:
        width = k * D
        prows = rows // k
        xp = x2.reshape(prows, width)        # free: same row-major layout
        tile = _choose_tile_rows(prows, width * itemsize, target_tile_bytes, pack)
        grid = (pl.cdiv(prows, tile),)       # ragged last block allowed; no pad
        scale_w = jnp.tile(scale.astype(jnp.float32).reshape(1, D), (1, k))
        shift_w = jnp.tile(shift.astype(jnp.float32).reshape(1, D), (1, k))
        out = pl.pallas_call(
            _make_packed_kernel(k, D, eps),
            out_shape=jax.ShapeDtypeStruct((prows, width), dtype),
            grid_spec=pltpu.PrefetchScalarGridSpec(
                num_scalar_prefetch=0,
                grid=grid,
                in_specs=[
                    pl.BlockSpec((tile, width), lambda i: (i, 0)),
                    pl.BlockSpec((1, width), lambda i: (0, 0)),
                    pl.BlockSpec((1, width), lambda i: (0, 0)),
                ],
                out_specs=pl.BlockSpec((tile, width), lambda i: (i, 0)),
            ),
            compiler_params=compiler_params,
        )(xp, scale_w, shift_w)
        return out.reshape(orig_shape)

    # Unpacked path (D multiple of 128, awkward D, or rows % k != 0 fallback).
    tile = _choose_tile_rows(rows, D * itemsize, target_tile_bytes, pack)
    grid = (pl.cdiv(rows, tile),)            # ragged last block allowed; no pad
    out = pl.pallas_call(
        _make_rowwise_kernel(eps),
        out_shape=jax.ShapeDtypeStruct((rows, D), dtype),
        grid_spec=pltpu.PrefetchScalarGridSpec(
            num_scalar_prefetch=0,
            grid=grid,
            in_specs=[
                pl.BlockSpec((tile, D), lambda i: (i, 0)),
                pl.BlockSpec((1, D), lambda i: (0, 0)),
                pl.BlockSpec((1, D), lambda i: (0, 0)),
            ],
            out_specs=pl.BlockSpec((tile, D), lambda i: (i, 0)),
        ),
        compiler_params=compiler_params,
    )(x2,
      scale.astype(jnp.float32).reshape(1, D),
      shift.astype(jnp.float32).reshape(1, D))
    return out.reshape(orig_shape)


def _reference_layernorm(x, scale, shift, eps=1e-5):
    xf = x.astype(jnp.float32)
    mean = jnp.mean(xf, axis=-1, keepdims=True)
    var = jnp.mean((xf - mean) ** 2, axis=-1, keepdims=True)
    return (scale * (xf - mean) / jnp.sqrt(var + eps) + shift).astype(x.dtype)


if __name__ == "__main__":
    key = jax.random.PRNGKey(0)

    # Shape implied by the module: (batch, seq, embedding_dim).
    batch, seq, hidden = 2, 8, 32
    x = jax.random.normal(key, (batch, seq, hidden), dtype=jnp.float32)
    scale = jnp.ones((hidden,), dtype=jnp.float32)   # nn.Parameter(torch.ones(emb_dim))
    shift = jnp.zeros((hidden,), dtype=jnp.float32)  # nn.Parameter(torch.zeros(emb_dim))

    out = jax.block_until_ready(layer_normalization(x, scale, shift))
    ref = _reference_layernorm(x, scale, shift)
    assert out.shape == x.shape
    assert jnp.allclose(out, ref, atol=1e-5, rtol=1e-5), "mismatch (packed path)"

    # Extra coverage:
    #   (2, 7, 256): unpacked, ragged last block (no pad, no output slice)
    #   (1, 5, 32) : rows % k != 0 -> unpacked fallback, full-array block
    #   (4, 5, 96) : generalized lcm packing (k=4, 384-lane slab)
    #   (4, 37, 64): packed (k=2), multi-step grid with a ragged last block
    for shape in [(2, 7, 256), (1, 5, 32), (4, 5, 96), (4, 37, 64)]:
        k2 = jax.random.fold_in(key, shape[-1] + 131 * shape[-2])
        x2 = jax.random.normal(k2, shape, dtype=jnp.float32)
        s2 = jax.random.normal(jax.random.fold_in(k2, 1), (shape[-1],), dtype=jnp.float32)
        b2 = jax.random.normal(jax.random.fold_in(k2, 2), (shape[-1],), dtype=jnp.float32)
        o2 = jax.block_until_ready(layer_normalization(x2, s2, b2))
        r2 = _reference_layernorm(x2, s2, b2)
        assert o2.shape == x2.shape
        assert jnp.allclose(o2, r2, atol=1e-4, rtol=1e-4), f"mismatch at {shape}"

    print("KERNEL_OK")
</pallas_src>

<mosaic_0001>
module attributes {stable_mosaic.version = 11 : i64} {
  func.func @kernel(%arg0: i32, %arg1: memref<4x128xf32, #tpu.memory_space<vmem>>, %arg2: memref<1x128xf32, #tpu.memory_space<vmem>>, %arg3: memref<1x128xf32, #tpu.memory_space<vmem>>, %arg4: memref<4x128xf32, #tpu.memory_space<vmem>>) attributes {dimension_semantics = [#tpu.dimension_semantics<parallel>], iteration_bounds = array<i64: 1>, scalar_prefetch = 0 : i64, scratch_operands = 0 : i64, tpu.core_type = #tpu.core_type<tc>, window_params = [{transform_indices = @transform_0, window_bounds = array<i64: 4, 128>}, {pipeline_mode = #tpu.pipeline_mode<synchronous>, transform_indices = @transform_1, window_bounds = array<i64: 1, 128>}, {pipeline_mode = #tpu.pipeline_mode<synchronous>, transform_indices = @transform_2, window_bounds = array<i64: 1, 128>}, {transform_indices = @transform_3, window_bounds = array<i64: 4, 128>}]} {
    %c0 = arith.constant 0 : index
    %c0_0 = arith.constant 0 : index
    %0 = vector.load %arg1[%c0, %c0_0] : memref<4x128xf32, #tpu.memory_space<vmem>>, vector<4x128xf32>
    %1 = tpu.iota {dimensions = array<i32: 1>} : vector<1x128xi32>
    %cst = arith.constant 0.000000e+00 : f32
    %2 = vector.broadcast %cst : f32 to vector<4x128xf32>
    %cst_1 = arith.constant 0.000000e+00 : f32
    %3 = vector.broadcast %cst_1 : f32 to vector<4x128xf32>
    %c0_i32 = arith.constant 0 : i32
    %4 = vector.broadcast %c0_i32 : i32 to vector<1x128xi32>
    %5 = arith.cmpi sge, %1, %4 : vector<1x128xi32>
    %c32_i32 = arith.constant 32 : i32
    %6 = vector.broadcast %c32_i32 : i32 to vector<1x128xi32>
    %7 = arith.cmpi slt, %1, %6 : vector<1x128xi32>
    %8 = arith.andi %5, %7 : vector<1x128xi1>
    %cst_2 = arith.constant 0.000000e+00 : f32
    %9 = vector.shape_cast %8 : vector<1x128xi1> to vector<1x128xi1>
    %10 = vector.broadcast %9 : vector<1x128xi1> to vector<4x128xi1>
    %11 = vector.broadcast %cst_2 : f32 to vector<4x128xf32>
    %12 = arith.select %10, %0, %11 : vector<4x128xi1>, vector<4x128xf32>
    %cst_3 = arith.constant dense<0.000000e+00> : vector<4xf32>
    %13 = vector.multi_reduction <add>, %12, %cst_3 [1] : vector<4x128xf32> to vector<4xf32>
    %14 = vector.shape_cast %13 : vector<4xf32> to vector<4x1xf32>
    %cst_4 = arith.constant 3.125000e-02 : f32
    %15 = vector.broadcast %cst_4 : f32 to vector<4x1xf32>
    %16 = arith.mulf %14, %15 : vector<4x1xf32>
    %17 = vector.broadcast %16 : vector<4x1xf32> to vector<4x128xf32>
    %18 = arith.subf %0, %17 : vector<4x128xf32>
    %19 = arith.mulf %18, %18 : vector<4x128xf32>
    %cst_5 = arith.constant 0.000000e+00 : f32
    %20 = vector.shape_cast %8 : vector<1x128xi1> to vector<1x128xi1>
    %21 = vector.broadcast %20 : vector<1x128xi1> to vector<4x128xi1>
    %22 = vector.broadcast %cst_5 : f32 to vector<4x128xf32>
    %23 = arith.select %21, %19, %22 : vector<4x128xi1>, vector<4x128xf32>
    %cst_6 = arith.constant dense<0.000000e+00> : vector<4xf32>
    %24 = vector.multi_reduction <add>, %23, %cst_6 [1] : vector<4x128xf32> to vector<4xf32>
    %25 = vector.shape_cast %24 : vector<4xf32> to vector<4x1xf32>
    %cst_7 = arith.constant 3.125000e-02 : f32
    %26 = vector.broadcast %cst_7 : f32 to vector<4x1xf32>
    %27 = arith.mulf %25, %26 : vector<4x1xf32>
    %cst_8 = arith.constant 9.99999974E-6 : f32
    %28 = vector.broadcast %cst_8 : f32 to vector<4x1xf32>
    %29 = arith.addf %27, %28 : vector<4x1xf32>
    %30 = math.rsqrt %29 : vector<4x1xf32>
    %31 = vector.shape_cast %8 : vector<1x128xi1> to vector<1x128xi1>
    %32 = vector.broadcast %31 : vector<1x128xi1> to vector<4x128xi1>
    %33 = vector.shape_cast %16 : vector<4x1xf32> to vector<4x1xf32>
    %34 = vector.broadcast %33 : vector<4x1xf32> to vector<4x128xf32>
    %35 = arith.select %32, %34, %2 : vector<4x128xi1>, vector<4x128xf32>
    %36 = vector.shape_cast %8 : vector<1x128xi1> to vector<1x128xi1>
    %37 = vector.broadcast %36 : vector<1x128xi1> to vector<4x128xi1>
    %38 = vector.shape_cast %30 : vector<4x1xf32> to vector<4x1xf32>
    %39 = vector.broadcast %38 : vector<4x1xf32> to vector<4x128xf32>
    %40 = arith.select %37, %39, %3 : vector<4x128xi1>, vector<4x128xf32>
    %c32_i32_9 = arith.constant 32 : i32
    %41 = vector.broadcast %c32_i32_9 : i32 to vector<1x128xi32>
    %42 = arith.cmpi sge, %1, %41 : vector<1x128xi32>
    %c64_i32 = arith.constant 64 : i32
    %43 = vector.broadcast %c64_i32 : i32 to vector<1x128xi32>
    %44 = arith.cmpi slt, %1, %43 : vector<1x128xi32>
    %45 = arith.andi %42, %44 : vector<1x128xi1>
    %cst_10 = arith.constant 0.000000e+00 : f32
    %46 = vector.shape_cast %45 : vector<1x128xi1> to vector<1x128xi1>
    %47 = vector.broadcast %46 : vector<1x128xi1> to vector<4x128xi1>
    %48 = vector.broadcast %cst_10 : f32 to vector<4x128xf32>
    %49 = arith.select %47, %0, %48 : vector<4x128xi1>, vector<4x128xf32>
    %cst_11 = arith.constant dense<0.000000e+00> : vector<4xf32>
    %50 = vector.multi_reduction <add>, %49, %cst_11 [1] : vector<4x128xf32> to vector<4xf32>
    %51 = vector.shape_cast %50 : vector<4xf32> to vector<4x1xf32>
    %cst_12 = arith.constant 3.125000e-02 : f32
    %52 = vector.broadcast %cst_12 : f32 to vector<4x1xf32>
    %53 = arith.mulf %51, %52 : vector<4x1xf32>
    %54 = vector.broadcast %53 : vector<4x1xf32> to vector<4x128xf32>
    %55 = arith.subf %0, %54 : vector<4x128xf32>
    %56 = arith.mulf %55, %55 : vector<4x128xf32>
    %cst_13 = arith.constant 0.000000e+00 : f32
    %57 = vector.shape_cast %45 : vector<1x128xi1> to vector<1x128xi1>
    %58 = vector.broadcast %57 : vector<1x128xi1> to vector<4x128xi1>
    %59 = vector.broadcast %cst_13 : f32 to vector<4x128xf32>
    %60 = arith.select %58, %56, %59 : vector<4x128xi1>, vector<4x128xf32>
    %cst_14 = arith.constant dense<0.000000e+00> : vector<4xf32>
    %61 = vector.multi_reduction <add>, %60, %cst_14 [1] : vector<4x128xf32> to vector<4xf32>
    %62 = vector.shape_cast %61 : vector<4xf32> to vector<4x1xf32>
    %cst_15 = arith.constant 3.125000e-02 : f32
    %63 = vector.broadcast %cst_15 : f32 to vector<4x1xf32>
    %64 = arith.mulf %62, %63 : vector<4x1xf32>
    %cst_16 = arith.constant 9.99999974E-6 : f32
    %65 = vector.broadcast %cst_16 : f32 to vector<4x1xf32>
    %66 = arith.addf %64, %65 : vector<4x1xf32>
    %67 = math.rsqrt %66 : vector<4x1xf32>
    %68 = vector.shape_cast %45 : vector<1x128xi1> to vector<1x128xi1>
    %69 = vector.broadcast %68 : vector<1x128xi1> to vector<4x128xi1>
    %70 = vector.shape_cast %53 : vector<4x1xf32> to vector<4x1xf32>
    %71 = vector.broadcast %70 : vector<4x1xf32> to vector<4x128xf32>
    %72 = arith.select %69, %71, %35 : vector<4x128xi1>, vector<4x128xf32>
    %73 = vector.shape_cast %45 : vector<1x128xi1> to vector<1x128xi1>
    %74 = vector.broadcast %73 : vector<1x128xi1> to vector<4x128xi1>
    %75 = vector.shape_cast %67 : vector<4x1xf32> to vector<4x1xf32>
    %76 = vector.broadcast %75 : vector<4x1xf32> to vector<4x128xf32>
    %77 = arith.select %74, %76, %40 : vector<4x128xi1>, vector<4x128xf32>
    %c64_i32_17 = arith.constant 64 : i32
    %78 = vector.broadcast %c64_i32_17 : i32 to vector<1x128xi32>
    %79 = arith.cmpi sge, %1, %78 : vector<1x128xi32>
    %c96_i32 = arith.constant 96 : i32
    %80 = vector.broadcast %c96_i32 : i32 to vector<1x128xi32>
    %81 = arith.cmpi slt, %1, %80 : vector<1x128xi32>
    %82 = arith.andi %79, %81 : vector<1x128xi1>
    %cst_18 = arith.constant 0.000000e+00 : f32
    %83 = vector.shape_cast %82 : vector<1x128xi1> to vector<1x128xi1>
    %84 = vector.broadcast %83 : vector<1x128xi1> to vector<4x128xi1>
    %85 = vector.broadcast %cst_18 : f32 to vector<4x128xf32>
    %86 = arith.select %84, %0, %85 : vector<4x128xi1>, vector<4x128xf32>
    %cst_19 = arith.constant dense<0.000000e+00> : vector<4xf32>
    %87 = vector.multi_reduction <add>, %86, %cst_19 [1] : vector<4x128xf32> to vector<4xf32>
    %88 = vector.shape_cast %87 : vector<4xf32> to vector<4x1xf32>
    %cst_20 = arith.constant 3.125000e-02 : f32
    %89 = vector.broadcast %cst_20 : f32 to vector<4x1xf32>
    %90 = arith.mulf %88, %89 : vector<4x1xf32>
    %91 = vector.broadcast %90 : vector<4x1xf32> to vector<4x128xf32>
    %92 = arith.subf %0, %91 : vector<4x128xf32>
    %93 = arith.mulf %92, %92 : vector<4x128xf32>
    %cst_21 = arith.constant 0.000000e+00 : f32
    %94 = vector.shape_cast %82 : vector<1x128xi1> to vector<1x128xi1>
    %95 = vector.broadcast %94 : vector<1x128xi1> to vector<4x128xi1>
    %96 = vector.broadcast %cst_21 : f32 to vector<4x128xf32>
    %97 = arith.select %95, %93, %96 : vector<4x128xi1>, vector<4x128xf32>
    %cst_22 = arith.constant dense<0.000000e+00> : vector<4xf32>
    %98 = vector.multi_reduction <add>, %97, %cst_22 [1] : vector<4x128xf32> to vector<4xf32>
    %99 = vector.shape_cast %98 : vector<4xf32> to vector<4x1xf32>
    %cst_23 = arith.constant 3.125000e-02 : f32
    %100 = vector.broadcast %cst_23 : f32 to vector<4x1xf32>
    %101 = arith.mulf %99, %100 : vector<4x1xf32>
    %cst_24 = arith.constant 9.99999974E-6 : f32
    %102 = vector.broadcast %cst_24 : f32 to vector<4x1xf32>
    %103 = arith.addf %101, %102 : vector<4x1xf32>
    %104 = math.rsqrt %103 : vector<4x1xf32>
    %105 = vector.shape_cast %82 : vector<1x128xi1> to vector<1x128xi1>
    %106 = vector.broadcast %105 : vector<1x128xi1> to vector<4x128xi1>
    %107 = vector.shape_cast %90 : vector<4x1xf32> to vector<4x1xf32>
    %108 = vector.broadcast %107 : vector<4x1xf32> to vector<4x128xf32>
    %109 = arith.select %106, %108, %72 : vector<4x128xi1>, vector<4x128xf32>
    %110 = vector.shape_cast %82 : vector<1x128xi1> to vector<1x128xi1>
    %111 = vector.broadcast %110 : vector<1x128xi1> to vector<4x128xi1>
    %112 = vector.shape_cast %104 : vector<4x1xf32> to vector<4x1xf32>
    %113 = vector.broadcast %112 : vector<4x1xf32> to vector<4x128xf32>
    %114 = arith.select %111, %113, %77 : vector<4x128xi1>, vector<4x128xf32>
    %c96_i32_25 = arith.constant 96 : i32
    %115 = vector.broadcast %c96_i32_25 : i32 to vector<1x128xi32>
    %116 = arith.cmpi sge, %1, %115 : vector<1x128xi32>
    %c128_i32 = arith.constant 128 : i32
    %117 = vector.broadcast %c128_i32 : i32 to vector<1x128xi32>
    %118 = arith.cmpi slt, %1, %117 : vector<1x128xi32>
    %119 = arith.andi %116, %118 : vector<1x128xi1>
    %cst_26 = arith.constant 0.000000e+00 : f32
    %120 = vector.shape_cast %119 : vector<1x128xi1> to vector<1x128xi1>
    %121 = vector.broadcast %120 : vector<1x128xi1> to vector<4x128xi1>
    %122 = vector.broadcast %cst_26 : f32 to vector<4x128xf32>
    %123 = arith.select %121, %0, %122 : vector<4x128xi1>, vector<4x128xf32>
    %cst_27 = arith.constant dense<0.000000e+00> : vector<4xf32>
    %124 = vector.multi_reduction <add>, %123, %cst_27 [1] : vector<4x128xf32> to vector<4xf32>
    %125 = vector.shape_cast %124 : vector<4xf32> to vector<4x1xf32>
    %cst_28 = arith.constant 3.125000e-02 : f32
    %126 = vector.broadcast %cst_28 : f32 to vector<4x1xf32>
    %127 = arith.mulf %125, %126 : vector<4x1xf32>
    %128 = vector.broadcast %127 : vector<4x1xf32> to vector<4x128xf32>
    %129 = arith.subf %0, %128 : vector<4x128xf32>
    %130 = arith.mulf %129, %129 : vector<4x128xf32>
    %cst_29 = arith.constant 0.000000e+00 : f32
    %131 = vector.shape_cast %119 : vector<1x128xi1> to vector<1x128xi1>
    %132 = vector.broadcast %131 : vector<1x128xi1> to vector<4x128xi1>
    %133 = vector.broadcast %cst_29 : f32 to vector<4x128xf32>
    %134 = arith.select %132, %130, %133 : vector<4x128xi1>, vector<4x128xf32>
    %cst_30 = arith.constant dense<0.000000e+00> : vector<4xf32>
    %135 = vector.multi_reduction <add>, %134, %cst_30 [1] : vector<4x128xf32> to vector<4xf32>
    %136 = vector.shape_cast %135 : vector<4xf32> to vector<4x1xf32>
    %cst_31 = arith.constant 3.125000e-02 : f32
    %137 = vector.broadcast %cst_31 : f32 to vector<4x1xf32>
    %138 = arith.mulf %136, %137 : vector<4x1xf32>
    %cst_32 = arith.constant 9.99999974E-6 : f32
    %139 = vector.broadcast %cst_32 : f32 to vector<4x1xf32>
    %140 = arith.addf %138, %139 : vector<4x1xf32>
    %141 = math.rsqrt %140 : vector<4x1xf32>
    %142 = vector.shape_cast %119 : vector<1x128xi1> to vector<1x128xi1>
    %143 = vector.broadcast %142 : vector<1x128xi1> to vector<4x128xi1>
    %144 = vector.shape_cast %127 : vector<4x1xf32> to vector<4x1xf32>
    %145 = vector.broadcast %144 : vector<4x1xf32> to vector<4x128xf32>
    %146 = arith.select %143, %145, %109 : vector<4x128xi1>, vector<4x128xf32>
    %147 = vector.shape_cast %119 : vector<1x128xi1> to vector<1x128xi1>
    %148 = vector.broadcast %147 : vector<1x128xi1> to vector<4x128xi1>
    %149 = vector.shape_cast %141 : vector<4x1xf32> to vector<4x1xf32>
    %150 = vector.broadcast %149 : vector<4x1xf32> to vector<4x128xf32>
    %151 = arith.select %148, %150, %114 : vector<4x128xi1>, vector<4x128xf32>
    %152 = arith.subf %0, %146 : vector<4x128xf32>
    %153 = arith.mulf %152, %151 : vector<4x128xf32>
    %c0_33 = arith.constant 0 : index
    %c0_34 = arith.constant 0 : index
    %154 = vector.load %arg2[%c0_33, %c0_34] : memref<1x128xf32, #tpu.memory_space<vmem>>, vector<1x128xf32>
    %155 = vector.broadcast %154 : vector<1x128xf32> to vector<4x128xf32>
    %156 = arith.mulf %153, %155 : vector<4x128xf32>
    %c0_35 = arith.constant 0 : index
    %c0_36 = arith.constant 0 : index
    %157 = vector.load %arg3[%c0_35, %c0_36] : memref<1x128xf32, #tpu.memory_space<vmem>>, vector<1x128xf32>
    %158 = vector.broadcast %157 : vector<1x128xf32> to vector<4x128xf32>
    %159 = arith.addf %156, %158 : vector<4x128xf32>
    %c0_37 = arith.constant 0 : index
    %c0_38 = arith.constant 0 : index
    %160 = vector.load %arg4[%c0_37, %c0_38] : memref<4x128xf32, #tpu.memory_space<vmem>>, vector<4x128xf32>
    tpu.vector_store %arg4[%c0_37, %c0_38], %159 {strides = array<i32>} : memref<4x128xf32, #tpu.memory_space<vmem>>, vector<4x128xf32>,
    return
  }
  func.func @transform_0(%arg0: i32) -> (i32, i32) {
    %c0_i32 = arith.constant 0 : i32
    %c0_i32_0 = arith.constant 0 : i32
    return %arg0, %c0_i32 : i32, i32
  }
  func.func @transform_1(%arg0: i32) -> (i32, i32) {
    %c0_i32 = arith.constant 0 : i32
    %c0_i32_0 = arith.constant 0 : i32
    %c0_i32_1 = arith.constant 0 : i32
    return %c0_i32, %c0_i32_0 : i32, i32
  }
  func.func @transform_2(%arg0: i32) -> (i32, i32) {
    %c0_i32 = arith.constant 0 : i32
    %c0_i32_0 = arith.constant 0 : i32
    %c0_i32_1 = arith.constant 0 : i32
    return %c0_i32, %c0_i32_0 : i32, i32
  }
  func.func @transform_3(%arg0: i32) -> (i32, i32) {
    %c0_i32 = arith.constant 0 : i32
    %c0_i32_0 = arith.constant 0 : i32
    return %arg0, %c0_i32 : i32, i32
  }
}

</mosaic_0001>

<llo_original>
// kernel: tpu_custom_call.1
$region0: #{tpu_custom_call.1}
  #allocation0 [shape = 'u32[]', space=smem, size = 0x4, offset = 0x4, fixed_abs, tag = 'smem constant byte address 0x4 - core index']
  #allocation1 [shape = 'u32[144,128]{1,0:T(1,128)}', space=vmem, size = 0x12000, scoped, tag = 'internal scratch']
  %s0 = inlined_call_operand.hbm [shape: f32[4,128], index: 0, kind: input, shape index: {}]
  %s1 = inlined_call_operand.vmem [shape: f32[1,128], index: 1, kind: input, shape index: {}]
  %s2 = inlined_call_operand.vmem [shape: f32[1,128], index: 2, kind: input, shape index: {}]
  %s3 = inlined_call_operand.hbm [shape: f32[4,128], index: 3, kind: output, shape index: {}]
  %s4 = sld [smem:[#allocation0]]
  $region26: #{tpu_custom_call.1} parent=0
    _
  %s6 = ssub.s32 1, %s4
  %s7 = scalar_select 0, %s6, %s4
  $region1: #{tpu_custom_call.1} parent=0
    #allocation2 [shape = 'u8[2048]{0}', space=vmem, size = 0x800, scoped, tag = 'input window, operand 0, single buffered']
    #allocation3 [shape = 's32[1]{0}', space=sflag, size = 0x4, scoped, tag = 'scoped memory for tpu_custom_call.1']
    #allocation4 [shape = 's32[1]{0}', space=sflag, size = 0x4, scoped, tag = 'scoped memory for tpu_custom_call.1']
    #allocation5 [shape = 'u8[2048]{0}', space=vmem, size = 0x800, scoped, tag = 'output window, operand 0, single buffered']
    %8 = vsyncpa [#allocation3], 0
    %9 = vsyncpa [#allocation4], 0
    // Predicated region
    $region2: #{tpu_custom_call.1} parent=1 // pred_check
      _
    $region3: #{tpu_custom_call.1} parent=1 // pred_check_branch
      %11 = sbr.rel (0) target = $region5
    $region4: #{tpu_custom_call.1} parent=1 // pred_region
      %s13 = ssub.s32 64, 64
      %14 = vsyncadd [#allocation3], %s13
      %s16 = sshll.u32 [#allocation2], 4
      %s17 = int_to_ptr.vmem [resolvable:$true] %s16
      %19 = dma.hbm_to_vmem [thread:$0]  %s0, 64, %s17, [#allocation3]
    $region5: #{tpu_custom_call.1} parent=1 // pred_fallthru
      _
    // Predicated region
    $region6: #{tpu_custom_call.1} parent=1 // pred_check
      _
    $region7: #{tpu_custom_call.1} parent=1 // pred_check_branch
      %21 = sbr.rel (0) target = $region9
    $region8: #{tpu_custom_call.1} parent=1 // pred_region
      _
    $region9: #{tpu_custom_call.1} parent=1 // pred_fallthru
      _
    // Predicated region
    $region10: #{tpu_custom_call.1} parent=1 // pred_check
      _
    $region11: #{tpu_custom_call.1} parent=1 // pred_check_branch
      %23 = sbr.rel (0) target = $region13
    $region12: #{tpu_custom_call.1} parent=1 // pred_region
      _
    $region13: #{tpu_custom_call.1} parent=1 // pred_fallthru
      _
    // Predicated region
    $region14: #{tpu_custom_call.1} parent=1 // pred_check
      _
    $region15: #{tpu_custom_call.1} parent=1 // pred_check_branch
      %25 = sbr.rel (0) target = $region17
    $region16: #{tpu_custom_call.1} parent=1 // pred_region
      %26 = dma.done [#allocation3], 64
    $region17: #{tpu_custom_call.1} parent=1 // pred_fallthru
      _
    %v27 = vld [vmem:[#allocation2] sm:$0xf]
    %v28 = vlaneseq
    %v29 = vand.u32 %v28, 127
    %vm30 = vcmp.ge.s32.totalorder %v29, 0
    %vm31 = vcmp.lt.s32.totalorder %v29, 32
    %vm32 = vmand %vm30, %vm31
    %v33 = vsel %vm32, 1, 0
    %vm34 = vcmp.eq.s32.totalorder %v33, 1
    %v35 = vsel %vm34, %v27, 0.0
    %vm36 = vcmask 1043456
    %v37 = vsel %vm36, %v35, 0.0
    %38 = vadd.xlane.f32.xlu0 %v37
    %v39 = vpop.xlane.xlu0 %38
    %v40 = vmul.f32 %v39, 0.03125
    %v41 = vsub.f32 %v27, %v40
    %v42 = vmul.f32 %v41, %v41
    %v43 = vsel %vm34, %v42, 0.0
    %v44 = vsel %vm36, %v43, 0.0
    %45 = vadd.xlane.f32.xlu0 %v44
    %v46 = vpop.xlane.xlu0 %45
    %v47 = vmul.f32 %v46, 0.03125
    %v48 = vadd.f32 %v47, 1e-05
    %v49 = vrsqrt.pop %v48
    %v50 = vsel %vm34, %v40, 0.0
    %v51 = vsel %vm34, %v49, 0.0
    %vm52 = vcmp.ge.s32.totalorder %v29, 32
    %vm53 = vcmp.lt.s32.totalorder %v29, 64
    %vm54 = vmand %vm52, %vm53
    %v55 = vsel %vm54, 1, 0
    %vm56 = vcmp.eq.s32.totalorder %v55, 1
    %v57 = vsel %vm56, %v27, 0.0
    %v58 = vsel %vm36, %v57, 0.0
    %59 = vadd.xlane.f32.xlu0 %v58
    %v60 = vpop.xlane.xlu0 %59
    %v61 = vmul.f32 %v60, 0.03125
    %v62 = vsub.f32 %v27, %v61
    %v63 = vmul.f32 %v62, %v62
    %v64 = vsel %vm56, %v63, 0.0
    %v65 = vsel %vm36, %v64, 0.0
    %66 = vadd.xlane.f32.xlu0 %v65
    %v67 = vpop.xlane.xlu0 %66
    %v68 = vmul.f32 %v67, 0.03125
    %v69 = vadd.f32 %v68, 1e-05
    %v70 = vrsqrt.pop %v69
    %v71 = vsel %vm56, %v61, %v50
    %v72 = vsel %vm56, %v70, %v51
    %vm73 = vcmp.ge.s32.totalorder %v29, 64
    %vm74 = vcmp.lt.s32.totalorder %v29, 96
    %vm75 = vmand %vm73, %vm74
    %v76 = vsel %vm75, 1, 0
    %vm77 = vcmp.eq.s32.totalorder %v76, 1
    %v78 = vsel %vm77, %v27, 0.0
    %v79 = vsel %vm36, %v78, 0.0
    %80 = vadd.xlane.f32.xlu0 %v79
    %v81 = vpop.xlane.xlu0 %80
    %v82 = vmul.f32 %v81, 0.03125
    %v83 = vsub.f32 %v27, %v82
    %v84 = vmul.f32 %v83, %v83
    %v85 = vsel %vm77, %v84, 0.0
    %v86 = vsel %vm36, %v85, 0.0
    %87 = vadd.xlane.f32.xlu0 %v86
    %v88 = vpop.xlane.xlu0 %87
    %v89 = vmul.f32 %v88, 0.03125
    %v90 = vadd.f32 %v89, 1e-05
    %v91 = vrsqrt.pop %v90
    %v92 = vsel %vm77, %v82, %v71
    %v93 = vsel %vm77, %v91, %v72
    %vm94 = vcmp.ge.s32.totalorder %v29, 96
    %vm95 = vcmp.lt.s32.totalorder %v29, 128
    %vm96 = vmand %vm94, %vm95
    %v97 = vsel %vm96, 1, 0
    %vm98 = vcmp.eq.s32.totalorder %v97, 1
    %v99 = vsel %vm98, %v27, 0.0
    %v100 = vsel %vm36, %v99, 0.0
    %101 = vadd.xlane.f32.xlu0 %v100
    %v102 = vpop.xlane.xlu0 %101
    %v103 = vmul.f32 %v102, 0.03125
    %v104 = vsub.f32 %v27, %v103
    %v105 = vmul.f32 %v104, %v104
    %v106 = vsel %vm98, %v105, 0.0
    %v107 = vsel %vm36, %v106, 0.0
    %108 = vadd.xlane.f32.xlu0 %v107
    %v109 = vpop.xlane.xlu0 %108
    %v110 = vmul.f32 %v109, 0.03125
    %v111 = vadd.f32 %v110, 1e-05
    %v112 = vrsqrt.pop %v111
    %v113 = vsel %vm98, %v103, %v92
    %v114 = vsel %vm98, %v112, %v93
    %v115 = vsub.f32 %v27, %v113
    %v116 = vmul.f32 %v115, %v114
    %v117 = vld [vmem:[%s1] sm:$0x1]
    %v119 = vlaneseq
    %v120 = vshrl.u32 %v119, 7
    %v121 = vsub.s32 0, %v120
    %v122 = vrot.slane %v117, %v121
    %v124 = vmul.f32 %v116, %v122
    %v125 = vld [vmem:[%s2] sm:$0x1]
    %v127 = vlaneseq
    %v128 = vshrl.u32 %v127, 7
    %v129 = vsub.s32 0, %v128
    %v130 = vrot.slane %v125, %v129
    %v132 = vadd.f32 %v124, %v130
    %133 = vst [vmem:[#allocation5] sm:$0xf] %v132
    // Predicated region
    $region18: #{tpu_custom_call.1} parent=1 // pred_check
      _
    $region19: #{tpu_custom_call.1} parent=1 // pred_check_branch
      %135 = sbr.rel (0) target = $region21
    $region20: #{tpu_custom_call.1} parent=1 // pred_region
      %s137 = ssub.s32 64, 64
      %138 = vsyncadd [#allocation4], %s137
      %s140 = sshll.u32 [#allocation5], 4
      %s141 = int_to_ptr.vmem [resolvable:$true] %s140
      %143 = dma.vmem_to_hbm [thread:$0]  %s141, 64, %s3, [#allocation4]
    $region21: #{tpu_custom_call.1} parent=1 // pred_fallthru
      _
    // Predicated region
    $region22: #{tpu_custom_call.1} parent=1 // pred_check
      _
    $region23: #{tpu_custom_call.1} parent=1 // pred_check_branch
      %145 = sbr.rel (0) target = $region25
    $region24: #{tpu_custom_call.1} parent=1 // pred_region
      %146 = dma.done [#allocation4], 64
    $region25: #{tpu_custom_call.1} parent=1 // pred_fallthru
      _
    %147 = vsyncpa [#allocation3], 1
    %148 = vsyncpa [#allocation4], 1

</llo_original>
